<compile_context>
chip_gen: v7x
topology: tpu7x:2x2x1
jax: 0.10.0
libtpu: 0.0.40
codegen_flags: <defaults>
</compile_context>

<pallas_src>
import functools

import jax
import jax.numpy as jnp
from jax.experimental import pallas as pl
from jax.experimental.pallas import tpu as pltpu

_VMEM_LIMIT = 32 * 1024 * 1024  # explicit scoped-VMEM limit, safe on v5e/v6e/v7x


# ------------------------------- helpers ------------------------------------

def _round_up(x, m):
    return ((x + m - 1) // m) * m


def _pad2(a, rows, cols):
    a = a.astype(jnp.float32)
    return jnp.pad(a, ((0, rows - a.shape[0]), (0, cols - a.shape[1])))


# ----------------------------- Pallas kernels -------------------------------

def _matmul_kernel(a_ref, b_ref, bias_ref, o_ref, acc_ref, *, relu):
    """Tiled  O = [relu](A @ B + bias)  with K-reduction on grid axis 2."""
    @pl.when(pl.program_id(2) == 0)
    def _init():
        acc_ref[...] = jnp.zeros_like(acc_ref)

    acc_ref[...] += jnp.dot(a_ref[...], b_ref[...],
                            preferred_element_type=jnp.float32)

    @pl.when(pl.program_id(2) == pl.num_programs(2) - 1)
    def _finalize():
        r = acc_ref[...] + bias_ref[...]          # bias added exactly once
        if relu:
            r = jnp.maximum(r, 0.0)
        o_ref[...] = r.astype(o_ref.dtype)


def _gnn_proj_kernel(adj_ref, xw_ref, bg_ref, wh_ref, wt_ref,
                     rh_ref, rt_ref, acc_ref):
    """Fused GCN row-tile:  repr = relu(A_hat @ XW + b_g)  (accumulated over K),
    then (finalize) rh = repr @ W_h, rt = repr @ W_t — repr never hits HBM."""
    k = pl.program_id(1)

    @pl.when(k == 0)
    def _init():
        acc_ref[...] = jnp.zeros_like(acc_ref)

    acc_ref[...] += jnp.dot(adj_ref[...], xw_ref[...],
                            preferred_element_type=jnp.float32)

    @pl.when(k == pl.num_programs(1) - 1)
    def _finalize():
        rep = jnp.maximum(acc_ref[...] + bg_ref[...], 0.0)
        rh_ref[...] = jnp.dot(rep, wh_ref[...], preferred_element_type=jnp.float32)
        rt_ref[...] = jnp.dot(rep, wt_ref[...], preferred_element_type=jnp.float32)


def _pool_kernel(head_ref, tail_ref, rh_ref, rt_ref, inp_ref, wi_ref, bp_ref,
                 out_ref, gat_ref, *, te, n_valid):
    """Per edge-tile: out = rh[head] + rt[tail] + input @ W_i + b_p.

    head/tail are SMEM scalar-prefetch refs; rh/rt stay VMEM-resident.  The gather
    accumulates into a VMEM scratch tile (overlapping with the MXU matmul), then a
    single vectorized add feeds one unmasked, lane-dense store of the whole tile.
    """
    e0 = pl.program_id(0) * te

    def body(j, carry):
        h = jnp.clip(head_ref[e0 + j], 0, n_valid - 1)   # guard OOB indices
        t = jnp.clip(tail_ref[e0 + j], 0, n_valid - 1)
        gat_ref[pl.ds(j, 1), :] = rh_ref[pl.ds(h, 1), :] + rt_ref[pl.ds(t, 1), :]
        return carry

    # te is a multiple of 8 by construction (see wrapper), so unroll=8 is exact.
    jax.lax.fori_loop(0, te, body, 0, unroll=8)

    proj = jnp.dot(inp_ref[...], wi_ref[...], preferred_element_type=jnp.float32)
    out_ref[...] = proj + bp_ref[...] + gat_ref[...]


# ------------------------------ wrappers -------------------------------------

def _pallas_matmul(a, b, bias=None, relu=False, tm=256, tn=256, tk=256):
    M, K = a.shape
    K2, Nn = b.shape
    assert K == K2
    tm = min(tm, _round_up(M, 8))
    tn = min(tn, _round_up(Nn, 128))
    tk = min(tk, _round_up(K, 128))
    Mp, Np, Kp = _round_up(M, tm), _round_up(Nn, tn), _round_up(K, tk)

    ap = _pad2(a, Mp, Kp)
    bp_ = _pad2(b, Kp, Np)
    if bias is None:
        biasp = jnp.zeros((1, Np), jnp.float32)
    else:
        biasp = _pad2(bias.reshape(1, -1), 1, Np)

    grid = (Mp // tm, Np // tn, Kp // tk)
    out = pl.pallas_call(
        functools.partial(_matmul_kernel, relu=relu),
        out_shape=jax.ShapeDtypeStruct((Mp, Np), jnp.float32),
        grid_spec=pltpu.PrefetchScalarGridSpec(
            num_scalar_prefetch=0,
            grid=grid,
            in_specs=[pl.BlockSpec((tm, tk), lambda i, j, k: (i, k)),
                      pl.BlockSpec((tk, tn), lambda i, j, k: (k, j)),
                      pl.BlockSpec((1, tn), lambda i, j, k: (0, j))],
            out_specs=pl.BlockSpec((tm, tn), lambda i, j, k: (i, j)),
            scratch_shapes=[pltpu.VMEM((tm, tn), jnp.float32)]),
        compiler_params=pltpu.CompilerParams(
            dimension_semantics=("parallel", "parallel", "arbitrary"),
            vmem_limit_bytes=_VMEM_LIMIT),
        cost_estimate=pl.CostEstimate(
            flops=2 * Mp * Np * Kp, transcendentals=0,
            bytes_accessed=4 * (Mp * Kp + Kp * Np + Mp * Np)),
    )(ap, bp_, biasp)
    return out[:M, :Nn]


def _gnn_project_fused(a_hat, xw, b_g, w_h, w_t, tm=256, tk=256):
    N = a_hat.shape[0]
    H = xw.shape[1]
    EMB = w_h.shape[1]
    Hp = _round_up(H, 128)
    EMBp = _round_up(EMB, 128)
    tm = min(tm, _round_up(N, 8))
    tk = min(tk, _round_up(N, 128))
    Mp, Kp = _round_up(N, tm), _round_up(N, tk)

    adj = _pad2(a_hat, Mp, Kp)
    xwp = _pad2(xw, Kp, Hp)
    bgp = _pad2(b_g.reshape(1, -1), 1, Hp)
    whp = _pad2(w_h, Hp, EMBp)
    wtp = _pad2(w_t, Hp, EMBp)

    grid = (Mp // tm, Kp // tk)
    flops = 2 * Mp * Kp * Hp + 4 * Mp * Hp * EMBp
    bytes_acc = 4 * (Mp * Kp + Kp * Hp + 2 * Hp * EMBp + 2 * Mp * EMBp)

    rh, rt = pl.pallas_call(
        _gnn_proj_kernel,
        out_shape=(jax.ShapeDtypeStruct((Mp, EMBp), jnp.float32),
                   jax.ShapeDtypeStruct((Mp, EMBp), jnp.float32)),
        grid_spec=pltpu.PrefetchScalarGridSpec(
            num_scalar_prefetch=0,
            grid=grid,
            in_specs=[pl.BlockSpec((tm, tk), lambda i, k: (i, k)),
                      pl.BlockSpec((tk, Hp), lambda i, k: (k, 0)),
                      pl.BlockSpec((1, Hp), lambda i, k: (0, 0)),
                      pl.BlockSpec((Hp, EMBp), lambda i, k: (0, 0)),
                      pl.BlockSpec((Hp, EMBp), lambda i, k: (0, 0))],
            out_specs=[pl.BlockSpec((tm, EMBp), lambda i, k: (i, 0)),
                       pl.BlockSpec((tm, EMBp), lambda i, k: (i, 0))],
            scratch_shapes=[pltpu.VMEM((tm, Hp), jnp.float32)]),
        compiler_params=pltpu.CompilerParams(
            dimension_semantics=("parallel", "arbitrary"),
            vmem_limit_bytes=_VMEM_LIMIT),
        cost_estimate=pl.CostEstimate(flops=flops, transcendentals=0,
                                      bytes_accessed=bytes_acc),
    )(adj, xwp, bgp, whp, wtp)
    return rh[:N, :EMB], rt[:N, :EMB]


def _gnn_and_project(a_hat, xw, b_g, w_h, w_t):
    H = xw.shape[1]
    if _round_up(H, 128) <= 512:
        return _gnn_project_fused(a_hat, xw, b_g, w_h, w_t)
    # TODO(synk): very wide hidden dims -> materialise repr and project separately.
    repr_ = _pallas_matmul(a_hat, xw, bias=b_g, relu=True)
    return _pallas_matmul(repr_, w_h), _pallas_matmul(repr_, w_t)


def pool_from_link_pallas(rh, rt, head, tail, inp, w_i, b_p):
    N, EMB = rh.shape
    E = int(head.shape[0])
    F_in = inp.shape[1]
    EMBp = _round_up(EMB, 128)
    Fip = _round_up(F_in, 128)
    Np8 = _round_up(N, 8)
    te = min(128, _round_up(max(E, 1), 8))      # always a multiple of 8
    Ep = _round_up(E, te)

    rhp = _pad2(rh, Np8, EMBp)
    rtp = _pad2(rt, Np8, EMBp)
    inpp = _pad2(inp, Ep, Fip)
    wip = _pad2(w_i, Fip, EMBp)
    bpp = _pad2(b_p.reshape(1, -1), 1, EMBp)
    headp = jnp.pad(head.astype(jnp.int32).reshape(-1), (0, Ep - E))
    tailp = jnp.pad(tail.astype(jnp.int32).reshape(-1), (0, Ep - E))

    grid_spec = pltpu.PrefetchScalarGridSpec(
        num_scalar_prefetch=2,                       # head, tail -> SMEM
        grid=(Ep // te,),
        in_specs=[
            pl.BlockSpec((Np8, EMBp), lambda e, hd, tl: (0, 0)),   # rh (resident)
            pl.BlockSpec((Np8, EMBp), lambda e, hd, tl: (0, 0)),   # rt (resident)
            pl.BlockSpec((te, Fip), lambda e, hd, tl: (e, 0)),     # edge input tile
            pl.BlockSpec((Fip, EMBp), lambda e, hd, tl: (0, 0)),   # W_i
            pl.BlockSpec((1, EMBp), lambda e, hd, tl: (0, 0)),     # b_p
        ],
        out_specs=pl.BlockSpec((te, EMBp), lambda e, hd, tl: (e, 0)),
        scratch_shapes=[pltpu.VMEM((te, EMBp), jnp.float32)],      # gather tile
    )
    out = pl.pallas_call(
        functools.partial(_pool_kernel, te=te, n_valid=N),
        out_shape=jax.ShapeDtypeStruct((Ep, EMBp), jnp.float32),
        grid_spec=grid_spec,
        compiler_params=pltpu.CompilerParams(
            dimension_semantics=("parallel",),
            vmem_limit_bytes=_VMEM_LIMIT),
        cost_estimate=pl.CostEstimate(
            flops=2 * Ep * Fip * EMBp + 3 * Ep * EMBp,
            transcendentals=0,
            bytes_accessed=4 * (2 * Np8 * EMBp + Ep * Fip + Fip * EMBp + Ep * EMBp)),
    )(headp, tailp, rhp, rtp, inpp, wip, bpp)
    return out[:E, :EMB]


# ------------------------------ module port ----------------------------------

class BaseLinkEncoderPallas:
    """JAX/Pallas equivalent of BaseLinkEncoder.forward (concrete gnn + link pool)."""

    def __init__(self, emb_dim, params):
        self.emb_dim = emb_dim
        self.use_only_embedding = False
        self.p = params

    def embedding_only_mode(self, state=True):
        self.use_only_embedding = state

    def forward(self, g, head, tail, input, gnn_kwargs=None):
        p = self.p
        if self.use_only_embedding:
            repr_ = g['ndata_repr']
            rh = _pallas_matmul(repr_, p['w_h'])
            rt = _pallas_matmul(repr_, p['w_t'])
        else:
            # gnn(g): GCN layer, reassociated as A_hat @ (X @ W_g); projections fused.
            xw = _pallas_matmul(g['x'], p['w_g'])
            rh, rt = _gnn_and_project(g['a_hat'], xw, p['b_g'], p['w_h'], p['w_t'])
        return pool_from_link_pallas(rh, rt, head, tail, input, p['w_i'], p['b_p'])

    def get_out_dim(self):
        return self.emb_dim


# --------------------------------- demo ---------------------------------------

def _build_case(key, N, F, H, E, F_IN, EMB):
    k = jax.random.split(key, 10)
    x = jax.random.normal(k[0], (N, F), dtype=jnp.float32)
    adj = (jax.random.uniform(k[1], (N, N)) < 0.1).astype(jnp.float32)
    adj = jnp.minimum(jnp.maximum(adj, adj.T) + jnp.eye(N, dtype=jnp.float32), 1.0)
    d = 1.0 / jnp.sqrt(jnp.sum(adj, axis=1))
    a_hat = adj * d[:, None] * d[None, :]

    params = {
        'w_g': 0.1 * jax.random.normal(k[2], (F, H), dtype=jnp.float32),
        'b_g': 0.1 * jax.random.normal(k[3], (1, H), dtype=jnp.float32),
        'w_h': 0.1 * jax.random.normal(k[4], (H, EMB), dtype=jnp.float32),
        'w_t': 0.1 * jax.random.normal(k[5], (H, EMB), dtype=jnp.float32),
        'w_i': 0.1 * jax.random.normal(k[6], (F_IN, EMB), dtype=jnp.float32),
        'b_p': 0.1 * jax.random.normal(k[7], (1, EMB), dtype=jnp.float32),
    }
    head = jax.random.randint(k[8], (E,), 0, N, dtype=jnp.int32)
    tail = jax.random.randint(k[9], (E,), 0, N, dtype=jnp.int32)
    edge_input = jax.random.normal(k[0], (E, F_IN), dtype=jnp.float32)
    return a_hat, x, params, head, tail, edge_input


def _reference(a_hat, x, p, head, tail, inp):
    repr_ref = jnp.maximum((a_hat @ x) @ p['w_g'] + p['b_g'], 0.0)
    return (repr_ref[head] @ p['w_h'] + repr_ref[tail] @ p['w_t']
            + inp @ p['w_i'] + p['b_p'])


if __name__ == "__main__":
    key = jax.random.PRNGKey(0)
    k_small, k_large = jax.random.split(key)

    # --- small case (single tile per axis) ---
    N, F, H, E, F_IN, EMB = 16, 32, 32, 8, 16, 32
    a_hat, x, params, head, tail, edge_input = _build_case(k_small, N, F, H, E, F_IN, EMB)
    enc = BaseLinkEncoderPallas(EMB, params)
    g = {'a_hat': a_hat, 'x': x,
         'ndata_repr': jnp.maximum(jax.random.normal(k_small, (N, H)), 0.0)}

    out = jax.block_until_ready(enc.forward(g, head, tail, edge_input, gnn_kwargs={}))
    ref = _reference(a_hat, x, params, head, tail, edge_input)
    assert out.shape == (E, EMB)
    assert jnp.allclose(out, ref, atol=1e-3, rtol=1e-3)

    # embedding_only_mode path
    enc.embedding_only_mode(True)
    out2 = jax.block_until_ready(enc.forward(g, head, tail, edge_input))
    repr_e = g['ndata_repr']
    ref2 = (repr_e[head] @ params['w_h'] + repr_e[tail] @ params['w_t']
            + edge_input @ params['w_i'] + params['b_p'])
    assert jnp.allclose(out2, ref2, atol=1e-3, rtol=1e-3)
    enc.embedding_only_mode(False)

    # --- larger case (exercises multi-tile rows, K accumulation, multiple edge tiles) ---
    N, F, H, E, F_IN, EMB = 384, 320, 96, 300, 40, 48
    a_hat, x, params, head, tail, edge_input = _build_case(k_large, N, F, H, E, F_IN, EMB)
    enc_big = BaseLinkEncoderPallas(EMB, params)
    g_big = {'a_hat': a_hat, 'x': x, 'ndata_repr': None}
    out3 = jax.block_until_ready(enc_big.forward(g_big, head, tail, edge_input, gnn_kwargs={}))
    ref3 = _reference(a_hat, x, params, head, tail, edge_input)
    assert out3.shape == (E, EMB)
    assert jnp.allclose(out3, ref3, atol=1e-3, rtol=1e-3)

    print("KERNEL_OK")
</pallas_src>

<mosaic_0001>
module attributes {stable_mosaic.version = 11 : i64} {
  func.func @_matmul_kernel(%arg0: i32, %arg1: i32, %arg2: i32, %arg3: memref<16x128xf32, #tpu.memory_space<vmem>>, %arg4: memref<128x128xf32, #tpu.memory_space<vmem>>, %arg5: memref<1x128xf32, #tpu.memory_space<vmem>>, %arg6: memref<16x128xf32, #tpu.memory_space<vmem>>, %arg7: memref<16x128xf32, #tpu.memory_space<vmem>>) attributes {dimension_semantics = [#tpu.dimension_semantics<parallel>, #tpu.dimension_semantics<parallel>, #tpu.dimension_semantics<arbitrary>], iteration_bounds = array<i64: 1, 1, 1>, scalar_prefetch = 0 : i64, scratch_operands = 1 : i64, tpu.core_type = #tpu.core_type<tc>, window_params = [{transform_indices = @transform_0, window_bounds = array<i64: 16, 128>}, {transform_indices = @transform_1, window_bounds = array<i64: 128, 128>}, {transform_indices = @transform_2, window_bounds = array<i64: 1, 128>}, {transform_indices = @transform_3, window_bounds = array<i64: 16, 128>}]} {
    %c0_i32 = arith.constant 0 : i32
    %0 = arith.cmpi eq, %arg2, %c0_i32 : i32
    %1 = arith.extui %0 : i1 to i32
    %c0_i32_0 = arith.constant 0 : i32
    %2 = arith.cmpi ne, %1, %c0_i32_0 : i32
    scf.if %2 {
      %cst_10 = arith.constant 0.000000e+00 : f32
      %12 = vector.broadcast %cst_10 : f32 to vector<16x128xf32>
      %c0_11 = arith.constant 0 : index
      %c0_12 = arith.constant 0 : index
      %13 = vector.load %arg7[%c0_11, %c0_12] : memref<16x128xf32, #tpu.memory_space<vmem>>, vector<16x128xf32>
      tpu.vector_store %arg7[%c0_11, %c0_12], %12 {strides = array<i32>} : memref<16x128xf32, #tpu.memory_space<vmem>>, vector<16x128xf32>,
    } else {
    }
    %c0 = arith.constant 0 : index
    %c0_1 = arith.constant 0 : index
    %3 = vector.load %arg7[%c0, %c0_1] : memref<16x128xf32, #tpu.memory_space<vmem>>, vector<16x128xf32>
    %c0_2 = arith.constant 0 : index
    %c0_3 = arith.constant 0 : index
    %4 = vector.load %arg3[%c0_2, %c0_3] : memref<16x128xf32, #tpu.memory_space<vmem>>, vector<16x128xf32>
    %c0_4 = arith.constant 0 : index
    %c0_5 = arith.constant 0 : index
    %5 = vector.load %arg4[%c0_4, %c0_5] : memref<128x128xf32, #tpu.memory_space<vmem>>, vector<128x128xf32>
    %cst = arith.constant dense<0.000000e+00> : vector<16x128xf32>
    %6 = tpu.matmul %4, %5, %cst {dimension_numbers = #tpu.dot_dimension_numbers<[1], [0], [0], [1], [0, 0, 1, 1], [], []>} : vector<16x128xf32>, vector<128x128xf32>, vector<16x128xf32> -> vector<16x128xf32>
    %7 = arith.addf %3, %6 : vector<16x128xf32>
    %c0_6 = arith.constant 0 : index
    %c0_7 = arith.constant 0 : index
    %8 = vector.load %arg7[%c0_6, %c0_7] : memref<16x128xf32, #tpu.memory_space<vmem>>, vector<16x128xf32>
    tpu.vector_store %arg7[%c0_6, %c0_7], %7 {strides = array<i32>} : memref<16x128xf32, #tpu.memory_space<vmem>>, vector<16x128xf32>,
    %c0_i32_8 = arith.constant 0 : i32
    %9 = arith.cmpi eq, %arg2, %c0_i32_8 : i32
    %10 = arith.extui %9 : i1 to i32
    %c0_i32_9 = arith.constant 0 : i32
    %11 = arith.cmpi ne, %10, %c0_i32_9 : i32
    scf.if %11 {
      %c0_10 = arith.constant 0 : index
      %c0_11 = arith.constant 0 : index
      %12 = vector.load %arg7[%c0_10, %c0_11] : memref<16x128xf32, #tpu.memory_space<vmem>>, vector<16x128xf32>
      %c0_12 = arith.constant 0 : index
      %c0_13 = arith.constant 0 : index
      %13 = vector.load %arg5[%c0_12, %c0_13] : memref<1x128xf32, #tpu.memory_space<vmem>>, vector<1x128xf32>
      %14 = vector.broadcast %13 : vector<1x128xf32> to vector<16x128xf32>
      %15 = arith.addf %12, %14 : vector<16x128xf32>
      %c0_14 = arith.constant 0 : index
      %c0_15 = arith.constant 0 : index
      %16 = vector.load %arg6[%c0_14, %c0_15] : memref<16x128xf32, #tpu.memory_space<vmem>>, vector<16x128xf32>
      tpu.vector_store %arg6[%c0_14, %c0_15], %15 {strides = array<i32>} : memref<16x128xf32, #tpu.memory_space<vmem>>, vector<16x128xf32>,
    } else {
    }
    return
  }
  func.func @transform_0(%arg0: i32, %arg1: i32, %arg2: i32) -> (i32, i32) {
    %c0_i32 = arith.constant 0 : i32
    return %arg0, %arg2 : i32, i32
  }
  func.func @transform_1(%arg0: i32, %arg1: i32, %arg2: i32) -> (i32, i32) {
    %c0_i32 = arith.constant 0 : i32
    return %arg2, %arg1 : i32, i32
  }
  func.func @transform_2(%arg0: i32, %arg1: i32, %arg2: i32) -> (i32, i32) {
    %c0_i32 = arith.constant 0 : i32
    %c0_i32_0 = arith.constant 0 : i32
    return %c0_i32, %arg1 : i32, i32
  }
  func.func @transform_3(%arg0: i32, %arg1: i32, %arg2: i32) -> (i32, i32) {
    %c0_i32 = arith.constant 0 : i32
    return %arg0, %arg1 : i32, i32
  }
}

</mosaic_0001>

<llo_original>
// kernel: tpu_custom_call.1
$region0: #{tpu_custom_call.1}
  #allocation0 [shape = 'u32[]', space=smem, size = 0x4, offset = 0x4, fixed_abs, tag = 'smem constant byte address 0x4 - core index']
  #allocation1 [shape = 'u32[144,128]{1,0:T(1,128)}', space=vmem, size = 0x12000, scoped, tag = 'internal scratch']
  #allocation2 [shape = 'f32[16,128]{1,0:T(8,128)}', space=vmem, size = 0x2000, scoped, tag = 'scratch operand']
  %s0 = inlined_call_operand.hbm [shape: f32[16,128], index: 0, kind: input, shape index: {}]
  %s1 = inlined_call_operand.hbm [shape: f32[128,128], index: 1, kind: input, shape index: {}]
  %s2 = inlined_call_operand.vmem [shape: f32[1,128], index: 2, kind: input, shape index: {}]
  %s3 = inlined_call_operand.hbm [shape: f32[16,128], index: 3, kind: output, shape index: {}]
  %s4 = sld [smem:[#allocation0]]
  $region38: #{tpu_custom_call.1} parent=0
    _
  %s6 = ssub.s32 1, %s4
  %s7 = scalar_select 0, %s6, %s4
  $region1: #{tpu_custom_call.1} parent=0
    #allocation3 [shape = 'u8[8192]{0}', space=vmem, size = 0x2000, scoped, tag = 'input window, operand 0, single buffered']
    #allocation4 [shape = 's32[1]{0}', space=sflag, size = 0x4, scoped, tag = 'scoped memory for tpu_custom_call.1']
    #allocation5 [shape = 's32[1]{0}', space=sflag, size = 0x4, scoped, tag = 'scoped memory for tpu_custom_call.1']
    #allocation6 [shape = 'u8[65536]{0}', space=vmem, size = 0x10000, scoped, tag = 'input window, operand 1, single buffered']
    #allocation7 [shape = 's32[1]{0}', space=sflag, size = 0x4, scoped, tag = 'scoped memory for tpu_custom_call.1']
    #allocation8 [shape = 'u8[8192]{0}', space=vmem, size = 0x2000, scoped, tag = 'output window, operand 0, single buffered']
    %8 = vsyncpa [#allocation4], 0
    %9 = vsyncpa [#allocation7], 0
    %10 = vsyncpa [#allocation5], 0
    // Predicated region
    $region2: #{tpu_custom_call.1} parent=1 // pred_check
      _
    $region3: #{tpu_custom_call.1} parent=1 // pred_check_branch
      %12 = sbr.rel (0) target = $region5
    $region4: #{tpu_custom_call.1} parent=1 // pred_region
      %s14 = ssub.s32 256, 256
      %15 = vsyncadd [#allocation4], %s14
      %s16 = sshll.u32 [#allocation3], 4
      %s17 = int_to_ptr.vmem [resolvable:$true] %s16
      %22 = dma.hbm_to_vmem [thread:$0]  %s0, 256, %s17, [#allocation4], 128, 128, 8
    $region5: #{tpu_custom_call.1} parent=1 // pred_fallthru
      _
    // Predicated region
    $region6: #{tpu_custom_call.1} parent=1 // pred_check
      _
    $region7: #{tpu_custom_call.1} parent=1 // pred_check_branch
      %24 = sbr.rel (0) target = $region9
    $region8: #{tpu_custom_call.1} parent=1 // pred_region
      %s26 = ssub.s32 2048, 2048
      %27 = vsyncadd [#allocation7], %s26
      %s28 = sshll.u32 [#allocation6], 4
      %s29 = int_to_ptr.vmem [resolvable:$true] %s28
      %34 = dma.hbm_to_vmem [thread:$0]  %s1, 2048, %s29, [#allocation7], 128, 128, 8
    $region9: #{tpu_custom_call.1} parent=1 // pred_fallthru
      _
    // Predicated region
    $region10: #{tpu_custom_call.1} parent=1 // pred_check
      _
    $region11: #{tpu_custom_call.1} parent=1 // pred_check_branch
      %36 = sbr.rel (0) target = $region13
    $region12: #{tpu_custom_call.1} parent=1 // pred_region
      _
    $region13: #{tpu_custom_call.1} parent=1 // pred_fallthru
      _
    // Predicated region
    $region14: #{tpu_custom_call.1} parent=1 // pred_check
      _
    $region15: #{tpu_custom_call.1} parent=1 // pred_check_branch
      %38 = sbr.rel (0) target = $region17
    $region16: #{tpu_custom_call.1} parent=1 // pred_region
      %39 = dma.done [#allocation4], 256
    $region17: #{tpu_custom_call.1} parent=1 // pred_fallthru
      _
    // Predicated region
    $region18: #{tpu_custom_call.1} parent=1 // pred_check
      _
    $region19: #{tpu_custom_call.1} parent=1 // pred_check_branch
      %41 = sbr.rel (0) target = $region21
    $region20: #{tpu_custom_call.1} parent=1 // pred_region
      %42 = dma.done [#allocation7], 2048
    $region21: #{tpu_custom_call.1} parent=1 // pred_fallthru
      _
    %p43 = scmp.eq.s32.totalorder 0, 0
    // Predicated region
    $region22: #{tpu_custom_call.1} parent=1 // pred_check
      %p44 = pneg %p43
    $region23: #{tpu_custom_call.1} parent=1 // pred_check_branch
      %46 = sbr.rel (%p44) target = $region25
    $region24: #{tpu_custom_call.1} parent=1 // pred_region
      %47 = vst [vmem:[#allocation2] sm:$0xff] 0.0
      %48 = vst [vmem:[#allocation2 + $0x8] sm:$0xff] 0.0
    $region25: #{tpu_custom_call.1} parent=1 // pred_fallthru
      _
    %v49 = vld [vmem:[#allocation2] sm:$0xff]
    %v50 = vld [vmem:[#allocation2 + $0x8] sm:$0xff]
    %v51 = vld [vmem:[#allocation3] sm:$0xff]
    %v52 = vld [vmem:[#allocation3 + $0x8] sm:$0xff]
    %v53 = vld [vmem:[#allocation6] sm:$0xff]
    %v54 = vld [vmem:[#allocation6 + $0x8] sm:$0xff]
    %v55 = vld [vmem:[#allocation6 + $0x10] sm:$0xff]
    %v56 = vld [vmem:[#allocation6 + $0x18] sm:$0xff]
    %v57 = vld [vmem:[#allocation6 + $0x20] sm:$0xff]
    %v58 = vld [vmem:[#allocation6 + $0x28] sm:$0xff]
    %v59 = vld [vmem:[#allocation6 + $0x30] sm:$0xff]
    %v60 = vld [vmem:[#allocation6 + $0x38] sm:$0xff]
    %v61 = vld [vmem:[#allocation6 + $0x40] sm:$0xff]
    %v62 = vld [vmem:[#allocation6 + $0x48] sm:$0xff]
    %v63 = vld [vmem:[#allocation6 + $0x50] sm:$0xff]
    %v64 = vld [vmem:[#allocation6 + $0x58] sm:$0xff]
    %v65 = vld [vmem:[#allocation6 + $0x60] sm:$0xff]
    %v66 = vld [vmem:[#allocation6 + $0x68] sm:$0xff]
    %v67 = vld [vmem:[#allocation6 + $0x70] sm:$0xff]
    %v68 = vld [vmem:[#allocation6 + $0x78] sm:$0xff]
    %69 = vmatprep.subr.mxu0 0.0
    %70 = vmatpush1.msra.mxu0 %v53
    %71 = vmatprep.subr.mxu0 0.0
    %72 = vmatpush1.msra.mxu0 %v54
    %73 = vmatprep.subr.mxu0 0.0
    %74 = vmatpush1.msra.mxu0 %v55
    %75 = vmatprep.subr.mxu0 0.0
    %76 = vmatpush1.msra.mxu0 %v56
    %77 = vmatprep.subr.mxu0 0.0
    %78 = vmatpush1.msra.mxu0 %v57
    %79 = vmatprep.subr.mxu0 0.0
    %80 = vmatpush1.msra.mxu0 %v58
    %81 = vmatprep.subr.mxu0 0.0
    %82 = vmatpush1.msra.mxu0 %v59
    %83 = vmatprep.subr.mxu0 0.0
    %84 = vmatpush1.msra.mxu0 %v60
    %85 = vmatprep.subr.mxu0 0.0
    %86 = vmatpush1.msra.mxu0 %v61
    %87 = vmatprep.subr.mxu0 0.0
    %88 = vmatpush1.msra.mxu0 %v62
    %89 = vmatprep.subr.mxu0 0.0
    %90 = vmatpush1.msra.mxu0 %v63
    %91 = vmatprep.subr.mxu0 0.0
    %92 = vmatpush1.msra.mxu0 %v64
    %93 = vmatprep.subr.mxu0 0.0
    %94 = vmatpush1.msra.mxu0 %v65
    %95 = vmatprep.subr.mxu0 0.0
    %96 = vmatpush1.msra.mxu0 %v66
    %97 = vmatprep.subr.mxu0 0.0
    %98 = vmatpush1.msra.mxu0 %v67
    %99 = vmatprep.subr.mxu0 0.0
    %100 = vmatpush1.msra.mxu0 %v68
    %101 = vmatprep.subr.mxu0 0.0
    %102 = vmatpush1.msra.mxu0 0.0
    %103 = vmatprep.subr.mxu0 0.0
    %104 = vmatpush1.msra.mxu0 0.0
    %105 = vmatprep.subr.mxu0 0.0
    %106 = vmatpush1.msra.mxu0 0.0
    %107 = vmatprep.subr.mxu0 0.0
    %108 = vmatpush1.msra.mxu0 0.0
    %109 = vmatprep.subr.mxu0 0.0
    %110 = vmatpush1.msra.mxu0 0.0
    %111 = vmatprep.subr.mxu0 0.0
    %112 = vmatpush1.msra.mxu0 0.0
    %113 = vmatprep.subr.mxu0 0.0
    %114 = vmatpush1.msra.mxu0 0.0
    %115 = vmatprep.subr.mxu0 0.0
    %116 = vmatpush1.msra.mxu0 0.0
    %117 = vmatprep.subr.mxu0 0.0
    %118 = vmatpush1.msra.mxu0 0.0
    %119 = vmatprep.subr.mxu0 0.0
    %120 = vmatpush1.msra.mxu0 0.0
    %121 = vmatprep.subr.mxu0 0.0
    %122 = vmatpush1.msra.mxu0 0.0
    %123 = vmatprep.subr.mxu0 0.0
    %124 = vmatpush1.msra.mxu0 0.0
    %125 = vmatprep.subr.mxu0 0.0
    %126 = vmatpush1.msra.mxu0 0.0
    %127 = vmatprep.subr.mxu0 0.0
    %128 = vmatpush1.msra.mxu0 0.0
    %129 = vmatprep.subr.mxu0 0.0
    %130 = vmatpush1.msra.mxu0 0.0
    %131 = vmatprep.subr.mxu0 0.0
    %132 = vmatpush1.msra.mxu0 0.0
    %133 = vmatprep.mubr.f32.mxu0 0.0
    %134 = vmatmul.mubr.f32.gmra.mrb[0].mxu0 %v51
    %v135 = vpop.f32.mrb[0].mxu0
    %v136 = vadd.f32 0.0, %v135
    %v137 = vpop.f32.mrb[0].mxu0
    %138 = vmatprep.mubr.f32.mxu0 0.0
    %139 = vmatmul.mubr.f32.gmra.mrb[0].mxu0 %v52
    %v140 = vpop.f32.mrb[0].mxu0
    %v141 = vadd.f32 0.0, %v140
    %v142 = vpop.f32.mrb[0].mxu0
    %143 = vdwg.mxu0
    %v144 = vadd.f32 %v49, %v136
    %v145 = vadd.f32 %v50, %v141
    %146 = vst [vmem:[#allocation2] sm:$0xff] %v144
    %147 = vst [vmem:[#allocation2 + $0x8] sm:$0xff] %v145
    // Predicated region
    $region26: #{tpu_custom_call.1} parent=1 // pred_check
      %p148 = pneg %p43
    $region27: #{tpu_custom_call.1} parent=1 // pred_check_branch
      %150 = sbr.rel (%p148) target = $region29
    $region28: #{tpu_custom_call.1} parent=1 // pred_region
      %v151 = vld [vmem:[#allocation2] sm:$0xff]
      %v152 = vld [vmem:[#allocation2 + $0x8] sm:$0xff]
      %v153 = vld [vmem:[%s2] sm:$0x1]
      %v155 = vlaneseq
      %v156 = vshrl.u32 %v155, 7
      %v157 = vsub.s32 0, %v156
      %v158 = vrot.slane %v153, %v157
      %v160 = vadd.f32 %v151, %v158
      %v161 = vadd.f32 %v152, %v158
      %162 = vst [vmem:[#allocation8] sm:$0xff] %v160
      %163 = vst [vmem:[#allocation8 + $0x8] sm:$0xff] %v161
    $region29: #{tpu_custom_call.1} parent=1 // pred_fallthru
      _
    // Predicated region
    $region30: #{tpu_custom_call.1} parent=1 // pred_check
      _
    $region31: #{tpu_custom_call.1} parent=1 // pred_check_branch
      %165 = sbr.rel (0) target = $region33
    $region32: #{tpu_custom_call.1} parent=1 // pred_region
      %s167 = ssub.s32 256, 256
      %168 = vsyncadd [#allocation5], %s167
      %s169 = sshll.u32 [#allocation8], 4
      %s170 = int_to_ptr.vmem [resolvable:$true] %s169
      %175 = dma.vmem_to_hbm [thread:$0]  %s170, 256, %s3, [#allocation5], 128, 128, 8
    $region33: #{tpu_custom_call.1} parent=1 // pred_fallthru
      _
    // Predicated region
    $region34: #{tpu_custom_call.1} parent=1 // pred_check
      _
    $region35: #{tpu_custom_call.1} parent=1 // pred_check_branch
      %177 = sbr.rel (0) target = $region37
    $region36: #{tpu_custom_call.1} parent=1 // pred_region
      %178 = dma.done [#allocation5], 256
    $region37: #{tpu_custom_call.1} parent=1 // pred_fallthru
      _
    %179 = vsyncpa [#allocation4], 1
    %180 = vsyncpa [#allocation7], 1
    %181 = vsyncpa [#allocation5], 1

</llo_original>
